<compile_context>
chip_gen: v7x
topology: tpu7x:2x2x1
jax: 0.10.0
libtpu: 0.0.40
codegen_flags: <defaults>
</compile_context>

<pallas_src>
import functools

import jax
import jax.numpy as jnp
from jax import lax
from jax.experimental import pallas as pl
from jax.experimental.pallas import tpu as pltpu


def _round_up(x, m):
    return (x + m - 1) // m * m


def _embed_kernel(p_ref, w_ref, pb_ref, o_ref):
    # p_ref : (TN, K)      bf16  patch-pixel rows for this row tile
    # w_ref : (K, E_pad)   bf16  conv weight as a GEMM matrix (resident)
    # pb_ref: (TN, E_pad)  f32   pos_embed + conv bias, pre-tiled to TN rows (resident)
    # o_ref : (TN, E_pad)  f32
    proj = jnp.dot(p_ref[...], w_ref[...], preferred_element_type=jnp.float32)
    o_ref[...] = (proj + pb_ref[...]).astype(o_ref.dtype)


def embedding_layer(x_nhwc, conv_w, conv_b, pos_embed, patch_size, *, block_rows=512):
    """x_nhwc: (B,H,W,C); conv_w: (E,C,ps,ps); conv_b: (E,); pos_embed: (1,N,E)."""
    B, H, W, C = x_nhwc.shape
    E = conv_w.shape[0]
    ps = patch_size
    Ph, Pw = H // ps, W // ps
    N = Ph * Pw
    K = ps * ps * C
    M = B * N
    E_pad = _round_up(E, 128)                 # lane-dense output stores

    # Row tile = whole batches (multiple of N), capped near block_rows, and either
    # sublane (8) aligned or equal to the full row extent M (always a legal block).
    reps = max(1, min(B, block_rows // max(N, 1)))
    while (N * reps) % 8 != 0 and reps < B:
        reps += 1
    TN = N * reps

    # --- XLA glue (cheap, one-time relayouts) --------------------------------
    # Crop what the strided conv ignores and extract patches in (kh, kw, c) order,
    # casting to bf16 in the same fused op (half-sized intermediate).
    xc = x_nhwc[:, : Ph * ps, : Pw * ps, :]
    patches = (
        xc.reshape(B, Ph, ps, Pw, ps, C)
        .transpose(0, 1, 3, 2, 4, 5)
        .reshape(M, K)
        .astype(jnp.bfloat16)
    )

    # Conv2d weight (E, C, ps, ps) -> (kh, kw, c, E) -> (K, E); bias folded into pos.
    w_flat = conv_w.transpose(2, 3, 1, 0).reshape(K, E).astype(jnp.float32)
    posb = pos_embed.reshape(N, E).astype(jnp.float32) + conv_b.reshape(1, E).astype(jnp.float32)
    if E_pad != E:
        w_flat = jnp.pad(w_flat, ((0, 0), (0, E_pad - E)))
        posb = jnp.pad(posb, ((0, 0), (0, E_pad - E)))
    w_flat = w_flat.astype(jnp.bfloat16)
    posb_tiled = jnp.tile(posb, (reps, 1))    # (TN, E_pad), resident in VMEM

    out = pl.pallas_call(
        _embed_kernel,
        out_shape=jax.ShapeDtypeStruct((M, E_pad), jnp.float32),
        grid=(pl.cdiv(M, TN),),
        in_specs=[
            pl.BlockSpec((TN, K), lambda j: (j, 0)),
            pl.BlockSpec((K, E_pad), lambda j: (0, 0)),      # resident weight
            pl.BlockSpec((TN, E_pad), lambda j: (0, 0)),     # resident pos+bias
        ],
        out_specs=pl.BlockSpec((TN, E_pad), lambda j: (j, 0)),
        compiler_params=pltpu.CompilerParams(
            dimension_semantics=("parallel",),
            vmem_limit_bytes=32 * 1024 * 1024,
        ),
    )(patches, w_flat, posb_tiled)

    out = out.reshape(B, N, E_pad)
    return out[..., :E] if E_pad != E else out


def _reference(x, conv_w, conv_b, pos_embed, patch_size):
    # Independent f32 reference: strided conv in NCHW (mirrors the PyTorch forward).
    B = x.shape[0]
    E = conv_w.shape[0]
    x_nchw = jnp.transpose(x, (0, 3, 1, 2))
    ref = lax.conv_general_dilated(
        x_nchw, conv_w, window_strides=(patch_size, patch_size), padding="VALID",
        dimension_numbers=("NCHW", "OIHW", "NCHW"),
        precision=lax.Precision.HIGHEST, preferred_element_type=jnp.float32)
    ref = ref + conv_b[None, :, None, None]
    n = ref.shape[2] * ref.shape[3]
    return ref.reshape(B, E, n).transpose(0, 2, 1) + pos_embed


if __name__ == "__main__":
    key = jax.random.PRNGKey(0)

    # Two small configs consistent with the module:
    #  (a) img_size not divisible by patch_size (like the default 65/8) to exercise
    #      the conv's implicit cropping, and E < 128 for the lane-padding path.
    #  (b) multi-batch with a small block_rows cap so the flattened-row grid has
    #      several steps including a partial last block.
    configs = [
        dict(B=2, img_size=17, patch_size=8, in_chans=3, embed_dim=32, block_rows=512),
        dict(B=3, img_size=33, patch_size=8, in_chans=1, embed_dim=64, block_rows=32),
    ]

    for cfg in configs:
        B, img_size, ps = cfg["B"], cfg["img_size"], cfg["patch_size"]
        C, E = cfg["in_chans"], cfg["embed_dim"]
        num_patches = (img_size // ps) ** 2

        key, kx, kw, kb, kp = jax.random.split(key, 5)
        x = jax.random.normal(kx, (B, img_size, img_size, C), jnp.float32)

        # Deterministic parameter init (shapes from the module's __init__).
        fan_in = C * ps * ps
        bound = 1.0 / (fan_in ** 0.5)
        conv_w = jax.random.uniform(kw, (E, C, ps, ps), jnp.float32, -bound, bound)
        conv_b = jax.random.uniform(kb, (E,), jnp.float32, -bound, bound)
        pos_embed = 0.02 * jax.random.truncated_normal(
            kp, -2.0, 2.0, (1, num_patches, E), jnp.float32)

        embed = jax.jit(functools.partial(
            embedding_layer, patch_size=ps, block_rows=cfg["block_rows"]))
        out = jax.block_until_ready(embed(x, conv_w, conv_b, pos_embed))
        assert out.shape == (B, num_patches, E), out.shape

        ref = _reference(x, conv_w, conv_b, pos_embed, ps)
        # bf16 matmul operands -> relaxed tolerance vs the f32 reference.
        max_err = float(jnp.max(jnp.abs(out - ref)))
        assert jnp.allclose(out, ref, atol=3e-2, rtol=3e-2), max_err

    print("KERNEL_OK")
</pallas_src>

<mosaic_0001>
module attributes {stable_mosaic.version = 11 : i64} {
  func.func @_embed_kernel(%arg0: i32, %arg1: memref<8x192xbf16, #tpu.memory_space<vmem>>, %arg2: memref<192x128xbf16, #tpu.memory_space<vmem>>, %arg3: memref<8x128xf32, #tpu.memory_space<vmem>>, %arg4: memref<8x128xf32, #tpu.memory_space<vmem>>) attributes {dimension_semantics = [#tpu.dimension_semantics<parallel>], iteration_bounds = array<i64: 1>, scalar_prefetch = 0 : i64, scratch_operands = 0 : i64, tpu.core_type = #tpu.core_type<tc>, window_params = [{transform_indices = @transform_0, window_bounds = array<i64: 8, 192>}, {pipeline_mode = #tpu.pipeline_mode<synchronous>, transform_indices = @transform_1, window_bounds = array<i64: 192, 128>}, {pipeline_mode = #tpu.pipeline_mode<synchronous>, transform_indices = @transform_2, window_bounds = array<i64: 8, 128>}, {transform_indices = @transform_3, window_bounds = array<i64: 8, 128>}]} {
    %c0 = arith.constant 0 : index
    %c0_0 = arith.constant 0 : index
    %0 = vector.load %arg1[%c0, %c0_0] : memref<8x192xbf16, #tpu.memory_space<vmem>>, vector<8x192xbf16>
    %c0_1 = arith.constant 0 : index
    %c0_2 = arith.constant 0 : index
    %1 = vector.load %arg2[%c0_1, %c0_2] : memref<192x128xbf16, #tpu.memory_space<vmem>>, vector<192x128xbf16>
    %cst = arith.constant dense<0.000000e+00> : vector<8x128xf32>
    %2 = tpu.matmul %0, %1, %cst {dimension_numbers = #tpu.dot_dimension_numbers<[1], [0], [0], [1], [0, 0, 1, 1], [], []>} : vector<8x192xbf16>, vector<192x128xbf16>, vector<8x128xf32> -> vector<8x128xf32>
    %c0_3 = arith.constant 0 : index
    %c0_4 = arith.constant 0 : index
    %3 = vector.load %arg3[%c0_3, %c0_4] : memref<8x128xf32, #tpu.memory_space<vmem>>, vector<8x128xf32>
    %4 = arith.addf %2, %3 : vector<8x128xf32>
    %c0_5 = arith.constant 0 : index
    %c0_6 = arith.constant 0 : index
    %5 = vector.load %arg4[%c0_5, %c0_6] : memref<8x128xf32, #tpu.memory_space<vmem>>, vector<8x128xf32>
    tpu.vector_store %arg4[%c0_5, %c0_6], %4 {strides = array<i32>} : memref<8x128xf32, #tpu.memory_space<vmem>>, vector<8x128xf32>,
    return
  }
  func.func @transform_0(%arg0: i32) -> (i32, i32) {
    %c0_i32 = arith.constant 0 : i32
    %c0_i32_0 = arith.constant 0 : i32
    return %arg0, %c0_i32 : i32, i32
  }
  func.func @transform_1(%arg0: i32) -> (i32, i32) {
    %c0_i32 = arith.constant 0 : i32
    %c0_i32_0 = arith.constant 0 : i32
    %c0_i32_1 = arith.constant 0 : i32
    return %c0_i32, %c0_i32_0 : i32, i32
  }
  func.func @transform_2(%arg0: i32) -> (i32, i32) {
    %c0_i32 = arith.constant 0 : i32
    %c0_i32_0 = arith.constant 0 : i32
    %c0_i32_1 = arith.constant 0 : i32
    return %c0_i32, %c0_i32_0 : i32, i32
  }
  func.func @transform_3(%arg0: i32) -> (i32, i32) {
    %c0_i32 = arith.constant 0 : i32
    %c0_i32_0 = arith.constant 0 : i32
    return %arg0, %c0_i32 : i32, i32
  }
}

</mosaic_0001>

<llo_original>
// kernel: embedding_layer.1
$region0: #{embedding_layer.1}
  #allocation0 [shape = 'u32[]', space=smem, size = 0x4, offset = 0x4, fixed_abs, tag = 'smem constant byte address 0x4 - core index']
  #allocation1 [shape = 'u32[144,128]{1,0:T(1,128)}', space=vmem, size = 0x12000, scoped, tag = 'internal scratch']
  %s0 = inlined_call_operand.vmem [shape: bf16[8,192], index: 0, kind: input, shape index: {}]
  %s1 = inlined_call_operand.vmem [shape: bf16[192,128], index: 1, kind: input, shape index: {}]
  %s2 = inlined_call_operand.vmem [shape: f32[8,128], index: 2, kind: input, shape index: {}]
  %s3 = inlined_call_operand.hbm [shape: f32[8,128], index: 3, kind: output, shape index: {}]
  %s4 = sld [smem:[#allocation0]]
  $region22: #{embedding_layer.1} parent=0
    _
  %s6 = ssub.s32 1, %s4
  %s7 = scalar_select 0, %s6, %s4
  $region1: #{embedding_layer.1} parent=0
    #allocation2 [shape = 'u8[4096]{0}', space=vmem, size = 0x1000, scoped, tag = 'output window, operand 0, single buffered']
    #allocation3 [shape = 's32[1]{0}', space=sflag, size = 0x4, scoped, tag = 'scoped memory for embedding_layer.1']
    %8 = vsyncpa [#allocation3], 0
    // Predicated region
    $region2: #{embedding_layer.1} parent=1 // pred_check
      _
    $region3: #{embedding_layer.1} parent=1 // pred_check_branch
      %10 = sbr.rel (0) target = $region5
    $region4: #{embedding_layer.1} parent=1 // pred_region
      _
    $region5: #{embedding_layer.1} parent=1 // pred_fallthru
      _
    // Predicated region
    $region6: #{embedding_layer.1} parent=1 // pred_check
      _
    $region7: #{embedding_layer.1} parent=1 // pred_check_branch
      %12 = sbr.rel (0) target = $region9
    $region8: #{embedding_layer.1} parent=1 // pred_region
      _
    $region9: #{embedding_layer.1} parent=1 // pred_fallthru
      _
    // Predicated region
    $region10: #{embedding_layer.1} parent=1 // pred_check
      _
    $region11: #{embedding_layer.1} parent=1 // pred_check_branch
      %14 = sbr.rel (0) target = $region13
    $region12: #{embedding_layer.1} parent=1 // pred_region
      _
    $region13: #{embedding_layer.1} parent=1 // pred_fallthru
      _
    %v16 = vld [vmem:[%s0] sm:$0xff]
    %v17 = vld [vmem:[%s1] sm:$0xf]
    %v18 = vld [vmem:[%s1 + $0x4] sm:$0xf]
    %v19 = vld [vmem:[%s1 + $0x8] sm:$0xf]
    %v20 = vld [vmem:[%s1 + $0xc] sm:$0xf]
    %v21 = vld [vmem:[%s1 + $0x10] sm:$0xf]
    %v22 = vld [vmem:[%s1 + $0x14] sm:$0xf]
    %v23 = vld [vmem:[%s1 + $0x18] sm:$0xf]
    %v24 = vld [vmem:[%s1 + $0x1c] sm:$0xf]
    %v25 = vld [vmem:[%s1 + $0x20] sm:$0xf]
    %v26 = vld [vmem:[%s1 + $0x24] sm:$0xf]
    %v27 = vld [vmem:[%s1 + $0x28] sm:$0xf]
    %v28 = vld [vmem:[%s1 + $0x2c] sm:$0xf]
    %v29 = vld [vmem:[%s1 + $0x30] sm:$0xf]
    %v30 = vld [vmem:[%s1 + $0x34] sm:$0xf]
    %v31 = vld [vmem:[%s1 + $0x38] sm:$0xf]
    %v32 = vld [vmem:[%s1 + $0x3c] sm:$0xf]
    %v33 = vld [vmem:[%s1 + $0x40] sm:$0xf]
    %v34 = vld [vmem:[%s1 + $0x44] sm:$0xf]
    %v35 = vld [vmem:[%s1 + $0x48] sm:$0xf]
    %v36 = vld [vmem:[%s1 + $0x4c] sm:$0xf]
    %v37 = vld [vmem:[%s1 + $0x50] sm:$0xf]
    %v38 = vld [vmem:[%s1 + $0x54] sm:$0xf]
    %v39 = vld [vmem:[%s1 + $0x58] sm:$0xf]
    %v40 = vld [vmem:[%s1 + $0x5c] sm:$0xf]
    %v41 = vld [vmem:[%s2] sm:$0xff]
    %v43 = vunpack.c.l.b16 %v16
    %v44 = vunpack.c.h.b16 %v16
    %v45 = vpack.c.b16 %v43, %v43
    %v46 = vpack.c.b16 %v44, %v44
    %v72 = vunpack.c.l.b16 %v17
    %v73 = vunpack.c.l.b16 %v18
    %v74 = vunpack.c.l.b16 %v19
    %v75 = vunpack.c.l.b16 %v20
    %v76 = vunpack.c.l.b16 %v21
    %v77 = vunpack.c.l.b16 %v22
    %v78 = vunpack.c.l.b16 %v23
    %v79 = vunpack.c.l.b16 %v24
    %v80 = vunpack.c.l.b16 %v25
    %v81 = vunpack.c.l.b16 %v26
    %v82 = vunpack.c.l.b16 %v27
    %v83 = vunpack.c.l.b16 %v28
    %v84 = vunpack.c.l.b16 %v29
    %v85 = vunpack.c.l.b16 %v30
    %v86 = vunpack.c.l.b16 %v31
    %v87 = vunpack.c.l.b16 %v32
    %v88 = vunpack.c.l.b16 %v33
    %v89 = vunpack.c.l.b16 %v34
    %v90 = vunpack.c.l.b16 %v35
    %v91 = vunpack.c.l.b16 %v36
    %v92 = vunpack.c.l.b16 %v37
    %v93 = vunpack.c.l.b16 %v38
    %v94 = vunpack.c.l.b16 %v39
    %v95 = vunpack.c.l.b16 %v40
    %v96 = vpack.c.b16 %v73, %v72
    %v97 = vpack.c.b16 %v75, %v74
    %v98 = vpack.c.b16 %v77, %v76
    %v99 = vpack.c.b16 %v79, %v78
    %v100 = vpack.c.b16 %v81, %v80
    %v101 = vpack.c.b16 %v83, %v82
    %v102 = vpack.c.b16 %v85, %v84
    %v103 = vpack.c.b16 %v87, %v86
    %v104 = vpack.c.b16 %v89, %v88
    %v105 = vpack.c.b16 %v91, %v90
    %v106 = vpack.c.b16 %v93, %v92
    %v107 = vpack.c.b16 %v95, %v94
    %vm120 = vcmask 523264
    %v122 = vsel %vm120, %v46, 0
    %124 = vmatprep.subr.bf16.mxu0 0
    %125 = vmatpush1.bf16.msra.mxu0 %v96
    %126 = vmatprep.subr.bf16.mxu0 0
    %127 = vmatpush1.bf16.msra.mxu0 %v97
    %128 = vmatprep.subr.bf16.mxu0 0
    %129 = vmatpush1.bf16.msra.mxu0 %v98
    %130 = vmatprep.subr.bf16.mxu0 0
    %131 = vmatpush1.bf16.msra.mxu0 %v99
    %132 = vmatprep.subr.bf16.mxu0 0
    %133 = vmatpush1.bf16.msra.mxu0 %v100
    %134 = vmatprep.subr.bf16.mxu0 0
    %135 = vmatpush1.bf16.msra.mxu0 %v101
    %136 = vmatprep.subr.bf16.mxu0 0
    %137 = vmatpush1.bf16.msra.mxu0 %v102
    %138 = vmatprep.subr.bf16.mxu0 0
    %139 = vmatpush1.bf16.msra.mxu0 %v103
    %140 = vmatprep.subr.bf16.mxu0 0
    %141 = vmatpush1.bf16.msra.mxu0 %v104
    %142 = vmatprep.subr.bf16.mxu0 0
    %143 = vmatpush1.bf16.msra.mxu0 %v105
    %144 = vmatprep.subr.bf16.mxu0 0
    %145 = vmatpush1.bf16.msra.mxu0 %v106
    %146 = vmatprep.subr.bf16.mxu0 0
    %147 = vmatpush1.bf16.msra.mxu0 %v107
    %148 = vmatprep.subr.bf16.mxu0 0
    %149 = vmatpush1.bf16.msra.mxu0 0
    %150 = vmatprep.subr.bf16.mxu0 0
    %151 = vmatpush1.bf16.msra.mxu0 0
    %152 = vmatprep.subr.bf16.mxu0 0
    %153 = vmatpush1.bf16.msra.mxu0 0
    %154 = vmatprep.subr.bf16.mxu0 0
    %155 = vmatpush1.bf16.msra.mxu0 0
    %156 = vmatprep.mubr.bf16.mxu0 %v122
    %157 = vmatmul.mubr.bf16.gmra.mrb[0].mxu0 %v45
    %v158 = vpop.f32.mrb[0].mxu0
    %v159 = vadd.f32 %v41, %v158
    %v160 = vpop.f32.mrb[0].mxu0
    %v161 = vpop.f32.mrb[0].mxu0
    %v162 = vpop.f32.mrb[0].mxu0
    %163 = vdwg.mxu0
    %164 = vst [vmem:[#allocation2] sm:$0xff] %v159
    // Predicated region
    $region14: #{embedding_layer.1} parent=1 // pred_check
      _
    $region15: #{embedding_layer.1} parent=1 // pred_check_branch
      %166 = sbr.rel (0) target = $region17
    $region16: #{embedding_layer.1} parent=1 // pred_region
      %s168 = ssub.s32 128, 128
      %169 = vsyncadd [#allocation3], %s168
      %s171 = sshll.u32 [#allocation2], 4
      %s172 = int_to_ptr.vmem [resolvable:$true] %s171
      %174 = dma.vmem_to_hbm [thread:$0]  %s172, 128, %s3, [#allocation3]
    $region17: #{embedding_layer.1} parent=1 // pred_fallthru
      _
    // Predicated region
    $region18: #{embedding_layer.1} parent=1 // pred_check
      _
    $region19: #{embedding_layer.1} parent=1 // pred_check_branch
      %176 = sbr.rel (0) target = $region21
    $region20: #{embedding_layer.1} parent=1 // pred_region
      %177 = dma.done [#allocation3], 128
    $region21: #{embedding_layer.1} parent=1 // pred_fallthru
      _
    %178 = vsyncpa [#allocation3], 1

</llo_original>
